<compile_context>
chip_gen: v6e
topology: v6e:2x2x1
jax: 0.10.0
libtpu: 0.0.40
codegen_flags: <defaults>
</compile_context>

<pallas_src>
import jax
import jax.numpy as jnp
from jax.experimental import pallas as pl
from jax.experimental.pallas import tpu as pltpu

LANE = 128                               # TPU lane width
_MAX_TM = 512                            # 512x1024 bf16 x-tile = 1 MiB
_SINGLE_BUFFER_WEIGHT_BYTES = 4 << 20    # single-buffer resident weights above this


def _round_up(v, m):
    return ((v + m - 1) // m) * m


def mlp2_sigmoid_kernel(x_ref, w1_ref, b1_ref, w2_ref, b2_ref, o_ref):
    # Layer 1: MXU matmul on the bf16 streams with f32 accumulation; bias add
    # and sigmoid in f32 (sigmoid goes to the EUP slot).
    h = jnp.dot(x_ref[...], w1_ref[...], preferred_element_type=jnp.float32)
    h = jax.nn.sigmoid(h + b1_ref[...])
    # Layer 2: cast activations back to the streaming dtype so the second
    # matmul also uses the MXU's native low-precision path; accumulate in f32.
    out = jnp.dot(h.astype(w2_ref.dtype), w2_ref[...],
                  preferred_element_type=jnp.float32)
    o_ref[...] = (out + b2_ref[...]).astype(o_ref.dtype)


def my_ann_l2_sigmoid_forward(x, params, *, tm=None,
                              compute_dtype=jnp.bfloat16,
                              out_dtype=jnp.float32):
    """x: (B, C, H, W) with C*H*W == 1024. Returns logits (B, 10) in float32."""
    B = x.shape[0]
    x_flat = x.reshape(B, -1)                      # torch.flatten(x, 1)

    w1, b1 = params["w1"], params["b1"]            # (1024, L1), (1, L1)
    w2, b2 = params["w2"], params["b2"]            # (L1, 10),   (1, 10)
    d_in, l1 = w1.shape
    n_out = w2.shape[1]

    # --- dtype handling: stream activations/weights at compute_dtype -------
    c_itemsize = jnp.dtype(compute_dtype).itemsize
    x_c = x_flat if x_flat.dtype == compute_dtype else x_flat.astype(compute_dtype)
    w1_c = w1.astype(compute_dtype)
    b1_f = b1.astype(jnp.float32)

    # Pad logits dim (10) up to a lane-dense 128 so the layer-2 matmul and the
    # output store use full 128-lane tiles (unmasked vst); sliced in wrapper.
    n_pad = _round_up(max(n_out, LANE), LANE)
    w2_c = jnp.pad(w2, ((0, 0), (0, n_pad - n_out))).astype(compute_dtype)
    b2_f = jnp.pad(b2, ((0, 0), (0, n_pad - n_out))).astype(jnp.float32)

    # --- batch tile selection ----------------------------------------------
    # Multiple of the sublane-packing height (16 rows for bf16, 8 for f32),
    # as large as possible up to _MAX_TM, but with >= 2 grid steps when B
    # allows so the "parallel" axis actually shards across both v7x TCs.
    tm_align = max(8, (8 * 4) // c_itemsize)
    if tm is None:
        if B >= 2 * tm_align:
            tm = min(_MAX_TM, _round_up(pl.cdiv(B, 2), tm_align))
            tm = min(tm, (B // tm_align) * tm_align)
        elif B >= tm_align:
            tm = tm_align
        elif B >= 8:
            tm = 8
        else:
            tm = B  # tiny batch: full-dim block (allowed: equals array dim)

    # No jnp.pad copy of x: cdiv grid + Pallas edge-block padding handle a
    # ragged last tile (rows are independent; OOB rows are dropped on write).
    grid = (pl.cdiv(B, tm),)

    # --- resident weights: single-buffer only when it matters (large L1) ---
    w_bytes = ((w1_c.size + w2_c.size) * c_itemsize
               + (b1_f.size + b2_f.size) * 4)
    single_buffer_weights = w_bytes > _SINGLE_BUFFER_WEIGHT_BYTES
    w_kwargs = {"pipeline_mode": pl.Buffered(1)} if single_buffer_weights else {}

    # --- explicit VMEM budget ------------------------------------------------
    x_tile_b = tm * d_in * c_itemsize
    o_tile_b = tm * n_pad * jnp.dtype(out_dtype).itemsize
    w_bufs = 1 if single_buffer_weights else 2
    vmem_est = 2 * (x_tile_b + o_tile_b) + w_bufs * w_bytes
    vmem_limit = int(min(max(2 * vmem_est, 16 << 20), 64 << 20))

    out = pl.pallas_call(
        mlp2_sigmoid_kernel,
        out_shape=jax.ShapeDtypeStruct((B, n_pad), out_dtype),
        grid_spec=pltpu.PrefetchScalarGridSpec(
            num_scalar_prefetch=0,
            grid=grid,
            in_specs=[
                # x: tiled along batch -> double-buffered / pipelined.
                pl.BlockSpec((tm, d_in), lambda i: (i, 0)),
                # weights/biases: constant index_map -> DMA'd once, resident.
                pl.BlockSpec((d_in, l1), lambda i: (0, 0), **w_kwargs),
                pl.BlockSpec((1, l1), lambda i: (0, 0), **w_kwargs),
                pl.BlockSpec((l1, n_pad), lambda i: (0, 0), **w_kwargs),
                pl.BlockSpec((1, n_pad), lambda i: (0, 0), **w_kwargs),
            ],
            out_specs=pl.BlockSpec((tm, n_pad), lambda i: (i, 0)),
        ),
        compiler_params=pltpu.CompilerParams(
            dimension_semantics=("parallel",),
            vmem_limit_bytes=vmem_limit,
        ),
    )(x_c, w1_c, b1_f, w2_c, b2_f)

    return out[:, :n_out].astype(jnp.float32)


def init_params(key, num_layer1):
    """PyTorch-style init: U(-1/sqrt(fan_in), 1/sqrt(fan_in)).
    Weights stored as (in_features, out_features)."""
    def linear_init(k, fan_in, fan_out):
        kw, kb = jax.random.split(k)
        bound = 1.0 / jnp.sqrt(jnp.float32(fan_in))
        w = jax.random.uniform(kw, (fan_in, fan_out), jnp.float32, -bound, bound)
        b = jax.random.uniform(kb, (1, fan_out), jnp.float32, -bound, bound)
        return w, b

    k1, k2 = jax.random.split(key)
    w1, b1 = linear_init(k1, 32 * 32, num_layer1)
    w2, b2 = linear_init(k2, num_layer1, 10)
    return {"w1": w1, "b1": b1, "w2": w2, "b2": b2}


def reference_forward_matched(x, params, compute_dtype=jnp.bfloat16):
    """Pure-JAX reference using the same bf16-operand / f32-accumulate recipe."""
    B = x.shape[0]
    xf = x.reshape(B, -1).astype(compute_dtype)
    w1 = params["w1"].astype(compute_dtype)
    w2 = params["w2"].astype(compute_dtype)
    h = jax.nn.sigmoid(
        jnp.dot(xf, w1, preferred_element_type=jnp.float32) + params["b1"])
    return (jnp.dot(h.astype(compute_dtype), w2,
                    preferred_element_type=jnp.float32) + params["b2"])


def reference_forward_f32(x, params):
    """Strict float32 reference (HIGHEST matmul precision)."""
    B = x.shape[0]
    h = x.reshape(B, -1)
    h = jax.nn.sigmoid(
        jnp.dot(h, params["w1"], precision=jax.lax.Precision.HIGHEST)
        + params["b1"])
    return (jnp.dot(h, params["w2"], precision=jax.lax.Precision.HIGHEST)
            + params["b2"])


if __name__ == "__main__":
    key = jax.random.PRNGKey(0)
    k_params, k_x = jax.random.split(key)

    num_layer1 = 128
    params = init_params(k_params, num_layer1)

    fwd = jax.jit(my_ann_l2_sigmoid_forward)

    # (B, C, H, W) = (32, 1, 32, 32): 1024 features; default tm=16 -> grid (2,)
    # so the pipelined batch grid (and the v7x two-step parallel axis) is
    # exercised.
    x = jax.random.normal(k_x, (32, 1, 32, 32), dtype=jnp.float32)
    out = jax.block_until_ready(fwd(x, params))
    assert out.shape == (32, 10), out.shape

    ref = reference_forward_matched(x, params)
    assert jnp.allclose(out, ref, atol=1e-4, rtol=1e-4), "mismatch vs matched ref"
    ref32 = reference_forward_f32(x, params)
    assert jnp.allclose(out, ref32, atol=5e-2), "mismatch vs f32 reference"

    # Ragged batch (B=20, tm=16 -> grid (2,) with a partial last tile) checks
    # the no-pad edge-block path.
    x_rag = jax.random.normal(jax.random.PRNGKey(1), (20, 1, 32, 32), jnp.float32)
    out_rag = jax.block_until_ready(fwd(x_rag, params))
    assert out_rag.shape == (20, 10), out_rag.shape
    ref_rag = reference_forward_matched(x_rag, params)
    assert jnp.allclose(out_rag, ref_rag, atol=1e-4, rtol=1e-4), "ragged mismatch"

    print("KERNEL_OK")
</pallas_src>

<mosaic_0001>
module attributes {stable_mosaic.version = 11 : i64} {
  func.func @mlp2_sigmoid_kernel(%arg0: i32, %arg1: memref<16x1024xbf16, #tpu.memory_space<vmem>>, %arg2: memref<1024x128xbf16, #tpu.memory_space<vmem>>, %arg3: memref<1x128xf32, #tpu.memory_space<vmem>>, %arg4: memref<128x128xbf16, #tpu.memory_space<vmem>>, %arg5: memref<1x128xf32, #tpu.memory_space<vmem>>, %arg6: memref<16x128xf32, #tpu.memory_space<vmem>>) attributes {dimension_semantics = [#tpu.dimension_semantics<parallel>], iteration_bounds = array<i64: 2>, scalar_prefetch = 0 : i64, scratch_operands = 0 : i64, tpu.core_type = #tpu.core_type<tc>, window_params = [{transform_indices = @transform_0, window_bounds = array<i64: 16, 1024>}, {pipeline_mode = #tpu.pipeline_mode<synchronous>, transform_indices = @transform_1, window_bounds = array<i64: 1024, 128>}, {pipeline_mode = #tpu.pipeline_mode<synchronous>, transform_indices = @transform_2, window_bounds = array<i64: 1, 128>}, {pipeline_mode = #tpu.pipeline_mode<synchronous>, transform_indices = @transform_3, window_bounds = array<i64: 128, 128>}, {pipeline_mode = #tpu.pipeline_mode<synchronous>, transform_indices = @transform_4, window_bounds = array<i64: 1, 128>}, {transform_indices = @transform_5, window_bounds = array<i64: 16, 128>}]} {
    %c0 = arith.constant 0 : index
    %c0_0 = arith.constant 0 : index
    %0 = vector.load %arg1[%c0, %c0_0] : memref<16x1024xbf16, #tpu.memory_space<vmem>>, vector<16x1024xbf16>
    %c0_1 = arith.constant 0 : index
    %c0_2 = arith.constant 0 : index
    %1 = vector.load %arg2[%c0_1, %c0_2] : memref<1024x128xbf16, #tpu.memory_space<vmem>>, vector<1024x128xbf16>
    %cst = arith.constant dense<0.000000e+00> : vector<16x128xf32>
    %2 = tpu.matmul %0, %1, %cst {dimension_numbers = #tpu.dot_dimension_numbers<[1], [0], [0], [1], [0, 0, 1, 1], [], []>} : vector<16x1024xbf16>, vector<1024x128xbf16>, vector<16x128xf32> -> vector<16x128xf32>
    %c0_3 = arith.constant 0 : index
    %c0_4 = arith.constant 0 : index
    %3 = vector.load %arg3[%c0_3, %c0_4] : memref<1x128xf32, #tpu.memory_space<vmem>>, vector<1x128xf32>
    %4 = vector.broadcast %3 : vector<1x128xf32> to vector<16x128xf32>
    %5 = arith.addf %2, %4 : vector<16x128xf32>
    %6 = arith.negf %5 : vector<16x128xf32>
    %7 = math.exp %6 : vector<16x128xf32>
    %cst_5 = arith.constant 1.000000e+00 : f32
    %8 = vector.broadcast %cst_5 : f32 to vector<16x128xf32>
    %9 = arith.addf %8, %7 : vector<16x128xf32>
    %10 = arith.divf %8, %9 : vector<16x128xf32>
    %11 = arith.truncf %10 : vector<16x128xf32> to vector<16x128xbf16>
    %c0_6 = arith.constant 0 : index
    %c0_7 = arith.constant 0 : index
    %12 = vector.load %arg4[%c0_6, %c0_7] : memref<128x128xbf16, #tpu.memory_space<vmem>>, vector<128x128xbf16>
    %cst_8 = arith.constant dense<0.000000e+00> : vector<16x128xf32>
    %13 = tpu.matmul %11, %12, %cst_8 {dimension_numbers = #tpu.dot_dimension_numbers<[1], [0], [0], [1], [0, 0, 1, 1], [], []>} : vector<16x128xbf16>, vector<128x128xbf16>, vector<16x128xf32> -> vector<16x128xf32>
    %c0_9 = arith.constant 0 : index
    %c0_10 = arith.constant 0 : index
    %14 = vector.load %arg5[%c0_9, %c0_10] : memref<1x128xf32, #tpu.memory_space<vmem>>, vector<1x128xf32>
    %15 = vector.broadcast %14 : vector<1x128xf32> to vector<16x128xf32>
    %16 = arith.addf %13, %15 : vector<16x128xf32>
    %c0_11 = arith.constant 0 : index
    %c0_12 = arith.constant 0 : index
    %17 = vector.load %arg6[%c0_11, %c0_12] : memref<16x128xf32, #tpu.memory_space<vmem>>, vector<16x128xf32>
    tpu.vector_store %arg6[%c0_11, %c0_12], %16 {strides = array<i32>} : memref<16x128xf32, #tpu.memory_space<vmem>>, vector<16x128xf32>,
    return
  }
  func.func @transform_0(%arg0: i32) -> (i32, i32) {
    %c0_i32 = arith.constant 0 : i32
    %c0_i32_0 = arith.constant 0 : i32
    return %arg0, %c0_i32 : i32, i32
  }
  func.func @transform_1(%arg0: i32) -> (i32, i32) {
    %c0_i32 = arith.constant 0 : i32
    %c0_i32_0 = arith.constant 0 : i32
    %c0_i32_1 = arith.constant 0 : i32
    return %c0_i32, %c0_i32_0 : i32, i32
  }
  func.func @transform_2(%arg0: i32) -> (i32, i32) {
    %c0_i32 = arith.constant 0 : i32
    %c0_i32_0 = arith.constant 0 : i32
    %c0_i32_1 = arith.constant 0 : i32
    return %c0_i32, %c0_i32_0 : i32, i32
  }
  func.func @transform_3(%arg0: i32) -> (i32, i32) {
    %c0_i32 = arith.constant 0 : i32
    %c0_i32_0 = arith.constant 0 : i32
    %c0_i32_1 = arith.constant 0 : i32
    return %c0_i32, %c0_i32_0 : i32, i32
  }
  func.func @transform_4(%arg0: i32) -> (i32, i32) {
    %c0_i32 = arith.constant 0 : i32
    %c0_i32_0 = arith.constant 0 : i32
    %c0_i32_1 = arith.constant 0 : i32
    return %c0_i32, %c0_i32_0 : i32, i32
  }
  func.func @transform_5(%arg0: i32) -> (i32, i32) {
    %c0_i32 = arith.constant 0 : i32
    %c0_i32_0 = arith.constant 0 : i32
    return %arg0, %c0_i32 : i32, i32
  }
}

</mosaic_0001>

<llo_original>
// kernel: my_ann_l2_sigmoid_forward.1
$region0: #{my_ann_l2_sigmoid_forward.1}
  #allocation0 [shape = 'u32[]', space=smem, size = 0x4, offset = 0x4, fixed_abs, tag = 'smem constant byte address 0x4 - core index']
  #allocation1 [shape = 'u32[144,128]{1,0:T(1,128)}', space=vmem, size = 0x12000, scoped, tag = 'internal scratch']
  %s0 = inlined_call_operand.vmem [shape: bf16[32,1024], index: 0, kind: input, shape index: {}]
  %s1 = inlined_call_operand.vmem [shape: bf16[1024,128], index: 1, kind: input, shape index: {}]
  %s2 = inlined_call_operand.vmem [shape: f32[1,128], index: 2, kind: input, shape index: {}]
  %s3 = inlined_call_operand.vmem [shape: bf16[128,128], index: 3, kind: input, shape index: {}]
  %s4 = inlined_call_operand.vmem [shape: f32[1,128], index: 4, kind: input, shape index: {}]
  %s5 = inlined_call_operand.vmem [shape: f32[32,128], index: 5, kind: output, shape index: {}]
  %s6 = sld [smem:[#allocation0]]
  $region53: #{my_ann_l2_sigmoid_forward.1} parent=0
    _
  %s8 = ssub.s32 1, %s6
  %s9 = scalar_select 0, %s8, %s6
  loop: start=0, step=1, limit=4
  $region2: #{my_ann_l2_sigmoid_forward.1} parent=0 // loop_pre_header
    _
  $region3: #{my_ann_l2_sigmoid_forward.1} parent=0 // loop_header
    %s11 = sphi 0, %s15
    %p12 = scmp.ge.s32.totalorder %s11, 4
    %s21 = sphi 0, %s23
    %s24 = sphi 0, %s21
    %s25 = sphi 0, %s24
    %s41 = sphi 0, %s25
    %s45 = sphi 0, %s45
    %s47 = sphi 0, %s45
    %s48 = sphi 0, %s47
    %s62 = sphi 0, %s48
    %s66 = sphi 0, %s66
    %s68 = sphi 0, %s66
    %s69 = sphi 0, %s68
    %s83 = sphi 0, %s69
    %s87 = sphi 0, %s87
    %s89 = sphi 0, %s87
    %s90 = sphi 0, %s89
    %s104 = sphi 0, %s90
    %s108 = sphi 0, %s108
    %s110 = sphi 0, %s108
    %s111 = sphi 0, %s110
    %s125 = sphi 0, %s111
    %s131 = sphi 0, %s133
    %s134 = sphi 0, %s131
    %s135 = sphi 0, %s134
    %s151 = sphi 0, %s135
  $region4: #{my_ann_l2_sigmoid_forward.1} parent=0 // loop_header_branch
    %14 = sbr.rel (%p12) target = $region8
  $region5: #{my_ann_l2_sigmoid_forward.1} parent=0 // loop_body
    %s16 = ssub.s32 %s11, 1
    %s17 = ssub.s32 %s11, 2
    %s18 = sadd.s32 %s11, 1
    %s19 = ssub.s32 %s11, %s18
    %p20 = scmp.eq.s32.totalorder %s19, 0
    %s22 = sadd.s32 %s21, 1
    %s23 = scalar_select %p20, %s21, %s22
    %p26 = pneg %p20
    %p27 = scmp.eq.s32.totalorder %s11, 1
    %p28 = por %p26, %p27
    %p29 = scmp.ne.s32.totalorder %s21, %s24
    %p30 = scmp.eq.s32.totalorder %s11, 0
    %p31 = por %p29, %p30
    %p32 = scmp.ne.s32.totalorder %s21, %s24
    %p33 = scmp.eq.s32.totalorder %s16, 1
    %p34 = por %p32, %p33
    %p35 = scmp.ne.s32.totalorder %s24, %s25
    %p36 = scmp.eq.s32.totalorder %s16, 0
    %p37 = por %p35, %p36
    %p38 = scmp.ne.s32.totalorder %s24, %s25
    %p39 = scmp.eq.s32.totalorder %s17, 1
    %p40 = por %p38, %p39
    %p42 = scmp.ne.s32.totalorder %s25, %s41
    %p43 = scmp.eq.s32.totalorder %s17, 0
    %p44 = por %p42, %p43
    %s46 = sadd.s32 %s45, 1
    %p49 = scmp.eq.s32.totalorder %s11, 1
    %p50 = scmp.ne.s32.totalorder %s45, %s47
    %p51 = scmp.eq.s32.totalorder %s11, 0
    %p52 = por %p50, %p51
    %p53 = scmp.ne.s32.totalorder %s45, %s47
    %p54 = scmp.eq.s32.totalorder %s16, 1
    %p55 = por %p53, %p54
    %p56 = scmp.ne.s32.totalorder %s47, %s48
    %p57 = scmp.eq.s32.totalorder %s16, 0
    %p58 = por %p56, %p57
    %p59 = scmp.ne.s32.totalorder %s47, %s48
    %p60 = scmp.eq.s32.totalorder %s17, 1
    %p61 = por %p59, %p60
    %p63 = scmp.ne.s32.totalorder %s48, %s62
    %p64 = scmp.eq.s32.totalorder %s17, 0
    %p65 = por %p63, %p64
    %s67 = sadd.s32 %s66, 1
    %p70 = scmp.eq.s32.totalorder %s11, 1
    %p71 = scmp.ne.s32.totalorder %s66, %s68
    %p72 = scmp.eq.s32.totalorder %s11, 0
    %p73 = por %p71, %p72
    %p74 = scmp.ne.s32.totalorder %s66, %s68
    %p75 = scmp.eq.s32.totalorder %s16, 1
    %p76 = por %p74, %p75
    %p77 = scmp.ne.s32.totalorder %s68, %s69
    %p78 = scmp.eq.s32.totalorder %s16, 0
    %p79 = por %p77, %p78
    %p80 = scmp.ne.s32.totalorder %s68, %s69
    %p81 = scmp.eq.s32.totalorder %s17, 1
    %p82 = por %p80, %p81
    %p84 = scmp.ne.s32.totalorder %s69, %s83
    %p85 = scmp.eq.s32.totalorder %s17, 0
    %p86 = por %p84, %p85
    %s88 = sadd.s32 %s87, 1
    %p91 = scmp.eq.s32.totalorder %s11, 1
    %p92 = scmp.ne.s32.totalorder %s87, %s89
    %p93 = scmp.eq.s32.totalorder %s11, 0
    %p94 = por %p92, %p93
    %p95 = scmp.ne.s32.totalorder %s87, %s89
    %p96 = scmp.eq.s32.totalorder %s16, 1
    %p97 = por %p95, %p96
    %p98 = scmp.ne.s32.totalorder %s89, %s90
    %p99 = scmp.eq.s32.totalorder %s16, 0
    %p100 = por %p98, %p99
    %p101 = scmp.ne.s32.totalorder %s89, %s90
    %p102 = scmp.eq.s32.totalorder %s17, 1
    %p103 = por %p101, %p102
    %p105 = scmp.ne.s32.totalorder %s90, %s104
    %p106 = scmp.eq.s32.totalorder %s17, 0
    %p107 = por %p105, %p106
    %s109 = sadd.s32 %s108, 1
    %p112 = scmp.eq.s32.totalorder %s11, 1
    %p113 = scmp.ne.s32.totalorder %s108, %s110
    %p114 = scmp.eq.s32.totalorder %s11, 0
    %p115 = por %p113, %p114
    %p116 = scmp.ne.s32.totalorder %s108, %s110
    %p117 = scmp.eq.s32.totalorder %s16, 1
    %p118 = por %p116, %p117
    %p119 = scmp.ne.s32.totalorder %s110, %s111
    %p120 = scmp.eq.s32.totalorder %s16, 0
    %p121 = por %p119, %p120
    %p122 = scmp.ne.s32.totalorder %s110, %s111
    %p123 = scmp.eq.s32.totalorder %s17, 1
    %p124 = por %p122, %p123
    %p126 = scmp.ne.s32.totalorder %s111, %s125
    %p127 = scmp.eq.s32.totalorder %s17, 0
    %p128 = por %p126, %p127
    %s129 = ssub.s32 %s11, %s18
    %p130 = scmp.eq.s32.totalorder %s129, 0
    %s132 = sadd.s32 %s131, 1
    %s133 = scalar_select %p130, %s131, %s132
    %p136 = pneg %p130
    %p137 = scmp.eq.s32.totalorder %s11, 1
    %p138 = por %p136, %p137
    %p139 = scmp.ne.s32.totalorder %s131, %s134
    %p140 = scmp.eq.s32.totalorder %s11, 0
    %p141 = por %p139, %p140
    %p142 = scmp.ne.s32.totalorder %s131, %s134
    %p143 = scmp.eq.s32.totalorder %s16, 1
    %p144 = por %p142, %p143
    %p145 = scmp.ne.s32.totalorder %s134, %s135
    %p146 = scmp.eq.s32.totalorder %s16, 0
    %p147 = por %p145, %p146
    %p148 = scmp.ne.s32.totalorder %s134, %s135
    %p149 = scmp.eq.s32.totalorder %s17, 1
    %p150 = por %p148, %p149
    %p152 = scmp.ne.s32.totalorder %s135, %s151
    %p153 = scmp.eq.s32.totalorder %s17, 0
    %p154 = por %p152, %p153
    %p155 = scmp.le.s32.totalorder 1, %s11
    %p156 = scmp.lt.s32.totalorder %s11, 3
    %p157 = pnand %p155, %p156
    %p158 = pneg %p157
    // Predicated region
    $region9: #{my_ann_l2_sigmoid_forward.1} parent=5 // pred_check
      _
    $region10: #{my_ann_l2_sigmoid_forward.1} parent=5 // pred_check_branch
      %160 = sbr.rel (%p157) target = $region12
    $region11: #{my_ann_l2_sigmoid_forward.1} parent=5 // pred_region
      %s161 = ssub.s32 %s11, 1
      // Predicated region
      $region13: #{my_ann_l2_sigmoid_forward.1} parent=11 // pred_check
        %p162 = pneg %p58
      $region14: #{my_ann_l2_sigmoid_forward.1} parent=11 // pred_check_branch
        %164 = sbr.rel (%p162) target = $region16
      $region15: #{my_ann_l2_sigmoid_forward.1} parent=11 // pred_region
        _
      $region16: #{my_ann_l2_sigmoid_forward.1} parent=11 // pred_fallthru
        _
      // Predicated region
      $region17: #{my_ann_l2_sigmoid_forward.1} parent=11 // pred_check
        %p165 = pneg %p79
      $region18: #{my_ann_l2_sigmoid_forward.1} parent=11 // pred_check_branch
        %167 = sbr.rel (%p165) target = $region20
      $region19: #{my_ann_l2_sigmoid_forward.1} parent=11 // pred_region
        _
      $region20: #{my_ann_l2_sigmoid_forward.1} parent=11 // pred_fallthru
        _
      // Predicated region
      $region21: #{my_ann_l2_sigmoid_forward.1} parent=11 // pred_check
        %p168 = pneg %p100
      $region22: #{my_ann_l2_sigmoid_forward.1} parent=11 // pred_check_branch
        %170 = sbr.rel (%p168) target = $region24
      $region23: #{my_ann_l2_sigmoid_forward.1} parent=11 // pred_region
        _
      $region24: #{my_ann_l2_sigmoid_forward.1} parent=11 // pred_fallthru
        _
      // Predicated region
      $region25: #{my_ann_l2_sigmoid_forward.1} parent=11 // pred_check
        %p171 = pneg %p121
      $region26: #{my_ann_l2_sigmoid_forward.1} parent=11 // pred_check_branch
        %173 = sbr.rel (%p171) target = $region28
      $region27: #{my_ann_l2_sigmoid_forward.1} parent=11 // pred_region
        _
      $region28: #{my_ann_l2_sigmoid_forward.1} parent=11 // pred_fallthru
        _
    $region12: #{my_ann_l2_sigmoid_forward.1} parent=5 // pred_fallthru
      _
    %p174 = scmp.lt.s32.totalorder %s11, 2
    // Predicated region
    $region29: #{my_ann_l2_sigmoid_forward.1} parent=5 // pred_check
      %p175 = pneg %p174
    $region30: #{my_ann_l2_sigmoid_forward.1} parent=5 // pred_check_branch
      %177 = sbr.rel (%p175) target = $region32
    $region31: #{my_ann_l2_sigmoid_forward.1} parent=5 // pred_region
      // Predicated region
      $region33: #{my_ann_l2_sigmoid_forward.1} parent=31 // pred_check
        %p178 = pneg %p31
      $region34: #{my_ann_l2_sigmoid_forward.1} parent=31 // pred_check_branch
        %180 = sbr.rel (%p178) target = $region36
      $region35: #{my_ann_l2_sigmoid_forward.1} parent=31 // pred_region
        %s181 = smul.u32 2, %s11
        %p182 = scmp.lt.s32.totalorder %s181, 3
        %s183 = scalar_select %p182, %s181, 3
        %s184 = smul.addr %s183, 8
        %s185 = smul.addr %s184, 4
        %s186 = scalar_lea.vmem %s0, %s185
        %s187 = smul.u32 2, %s11
      $region36: #{my_ann_l2_sigmoid_forward.1} parent=31 // pred_fallthru
        _
    $region32: #{my_ann_l2_sigmoid_forward.1} parent=5 // pred_fallthru
      _
    %p188 = scmp.le.s32.totalorder 1, %s11
    %p189 = scmp.lt.s32.totalorder %s11, 3
    %p190 = pnand %p188, %p189
    %p191 = pneg %p190
    // Predicated region
    $region37: #{my_ann_l2_sigmoid_forward.1} parent=5 // pred_check
      _
    $region38: #{my_ann_l2_sigmoid_forward.1} parent=5 // pred_check_branch
      %193 = sbr.rel (%p190) target = $region40
    $region39: #{my_ann_l2_sigmoid_forward.1} parent=5 // pred_region
      %s194 = ssub.s32 %s11, 1
      %s195 = smul.u32 2, %s16
      %p196 = scmp.lt.s32.totalorder %s195, 3
      %s197 = scalar_select %p196, %s195, 3
      %s198 = smul.addr %s197, 8
      %s199 = smul.addr %s198, 4
      %s200 = scalar_lea.vmem %s0, %s199
      %p201 = pneg %p37
      %p202 = pneg %p34
      %p203 = pneg %p58
      %p204 = pneg %p55
      %p205 = pneg %p79
      %p206 = pneg %p76
      %p207 = pneg %p100
      %p208 = pneg %p97
      %p209 = pneg %p121
      %p210 = pneg %p118
      %p211 = pneg %p147
      %p212 = pneg %p144
      %s213 = smul.u32 2, %s16
      %p214 = scmp.lt.s32.totalorder %s213, 3
      %s215 = scalar_select %p214, %s213, 3
      %s216 = smul.addr %s215, 8
      %s217 = scalar_lea.vmem %s5, %s216
      %s218 = smul.u32 2, %s16
      %p219 = scmp.lt.s32.totalorder %s218, 3
      %s220 = scalar_select %p219, %s218, 3
      %s221 = smul.addr %s220, 8
      %s222 = smul.addr %s221, 4
      %s223 = scalar_lea.vmem %s0, %s222
      %s224 = smul.u32 2, %s16
      %s225 = smul.u32 2, %s16
      %p226 = scmp.lt.s32.totalorder %s225, 3
      %s227 = scalar_select %p226, %s225, 3
      %s228 = smul.addr %s227, 8
      %s229 = scalar_lea.vmem %s5, %s228
      %s230 = smul.u32 2, %s16
      %v232 = vld [vmem:[%s223] sm:$0xff]
      %v233 = vld [vmem:[%s223 + $0x8] sm:$0xff]
      %v234 = vld [vmem:[%s223 + $0x10] sm:$0xff]
      %v235 = vld [vmem:[%s223 + $0x18] sm:$0xff]
      %v236 = vld [vmem:[%s223 + $0x20] sm:$0xff]
      %v237 = vld [vmem:[%s223 + $0x28] sm:$0xff]
      %v238 = vld [vmem:[%s223 + $0x30] sm:$0xff]
      %v239 = vld [vmem:[%s223 + $0x38] sm:$0xff]
      %v240 = vld [vmem:[%s1] sm:$0xf]
      %v241 = vld [vmem:[%s1 + $0x4] sm:$0xf]
      %v242 = vld [vmem:[%s1 + $0x8] sm:$0xf]
      %v243 = vld [vmem:[%s1 + $0xc] sm:$0xf]
      %v244 = vld [vmem:[%s1 + $0x10] sm:$0xf]
      %v245 = vld [vmem:[%s1 + $0x14] sm:$0xf]
      %v246 = vld [vmem:[%s1 + $0x18] sm:$0xf]
      %v247 = vld [vmem:[%s1 + $0x1c] sm:$0xf]
      %v248 = vld [vmem:[%s1 + $0x20] sm:$0xf]
      %v249 = vld [vmem:[%s1 + $0x24] sm:$0xf]
      %v250 = vld [vmem:[%s1 + $0x28] sm:$0xf]
      %v251 = vld [vmem:[%s1 + $0x2c] sm:$0xf]
      %v252 = vld [vmem:[%s1 + $0x30] sm:$0xf]
      %v253 = vld [vmem:[%s1 + $0x34] sm:$0xf]
      %v254 = vld [vmem:[%s1 + $0x38] sm:$0xf]
      %v255 = vld [vmem:[%s1 + $0x3c] sm:$0xf]
      %v256 = vld [vmem:[%s1 + $0x40] sm:$0xf]
      %v257 = vld [vmem:[%s1 + $0x44] sm:$0xf]
      %v258 = vld [vmem:[%s1 + $0x48] sm:$0xf]
      %v259 = vld [vmem:[%s1 + $0x4c] sm:$0xf]
      %v260 = vld [vmem:[%s1 + $0x50] sm:$0xf]
      %v261 = vld [vmem:[%s1 + $0x54] sm:$0xf]
      %v262 = vld [vmem:[%s1 + $0x58] sm:$0xf]
      %v263 = vld [vmem:[%s1 + $0x5c] sm:$0xf]
      %v264 = vld [vmem:[%s1 + $0x60] sm:$0xf]
      %v265 = vld [vmem:[%s1 + $0x64] sm:$0xf]
      %v266 = vld [vmem:[%s1 + $0x68] sm:$0xf]
      %v267 = vld [vmem:[%s1 + $0x6c] sm:$0xf]
      %v268 = vld [vmem:[%s1 + $0x70] sm:$0xf]
      %v269 = vld [vmem:[%s1 + $0x74] sm:$0xf]
      %v270 = vld [vmem:[%s1 + $0x78] sm:$0xf]
      %v271 = vld [vmem:[%s1 + $0x7c] sm:$0xf]
      %v272 = vld [vmem:[%s1 + $0x80] sm:$0xf]
      %v273 = vld [vmem:[%s1 + $0x84] sm:$0xf]
      %v274 = vld [vmem:[%s1 + $0x88] sm:$0xf]
      %v275 = vld [vmem:[%s1 + $0x8c] sm:$0xf]
      %v276 = vld [vmem:[%s1 + $0x90] sm:$0xf]
      %v277 = vld [vmem:[%s1 + $0x94] sm:$0xf]
      %v278 = vld [vmem:[%s1 + $0x98] sm:$0xf]
      %v279 = vld [vmem:[%s1 + $0x9c] sm:$0xf]
      %v280 = vld [vmem:[%s1 + $0xa0] sm:$0xf]
      %v281 = vld [vmem:[%s1 + $0xa4] sm:$0xf]
      %v282 = vld [vmem:[%s1 + $0xa8] sm:$0xf]
      %v283 = vld [vmem:[%s1 + $0xac] sm:$0xf]
      %v284 = vld [vmem:[%s1 + $0xb0] sm:$0xf]
      %v285 = vld [vmem:[%s1 + $0xb4] sm:$0xf]
      %v286 = vld [vmem:[%s1 + $0xb8] sm:$0xf]
      %v287 = vld [vmem:[%s1 + $0xbc] sm:$0xf]
      %v288 = vld [vmem:[%s1 + $0xc0] sm:$0xf]
      %v289 = vld [vmem:[%s1 + $0xc4] sm:$0xf]
      %v290 = vld [vmem:[%s1 + $0xc8] sm:$0xf]
      %v291 = vld [vmem:[%s1 + $0xcc] sm:$0xf]
      %v292 = vld [vmem:[%s1 + $0xd0] sm:$0xf]
      %v293 = vld [vmem:[%s1 + $0xd4] sm:$0xf]
      %v294 = vld [vmem:[%s1 + $0xd8] sm:$0xf]
      %v295 = vld [vmem:[%s1 + $0xdc] sm:$0xf]
      %v296 = vld [vmem:[%s1 + $0xe0] sm:$0xf]
      %v297 = vld [vmem:[%s1 + $0xe4] sm:$0xf]
      %v298 = vld [vmem:[%s1 + $0xe8] sm:$0xf]
      %v299 = vld [vmem:[%s1 + $0xec] sm:$0xf]
      %v300 = vld [vmem:[%s1 + $0xf0] sm:$0xf]
      %v301 = vld [vmem:[%s1 + $0xf4] sm:$0xf]
      %v302 = vld [vmem:[%s1 + $0xf8] sm:$0xf]
      %v303 = vld [vmem:[%s1 + $0xfc] sm:$0xf]
      %v304 = vld [vmem:[%s1 + $0x100] sm:$0xf]
      %v305 = vld [vmem:[%s1 + $0x104] sm:$0xf]
      %v306 = vld [vmem:[%s1 + $0x108] sm:$0xf]
      %v307 = vld [vmem:[%s1 + $0x10c] sm:$0xf]
      %v308 = vld [vmem:[%s1 + $0x110] sm:$0xf]
      %v309 = vld [vmem:[%s1 + $0x114] sm:$0xf]
      %v310 = vld [vmem:[%s1 + $0x118] sm:$0xf]
      %v311 = vld [vmem:[%s1 + $0x11c] sm:$0xf]
      %v312 = vld [vmem:[%s1 + $0x120] sm:$0xf]
      %v313 = vld [vmem:[%s1 + $0x124] sm:$0xf]
      %v314 = vld [vmem:[%s1 + $0x128] sm:$0xf]
      %v315 = vld [vmem:[%s1 + $0x12c] sm:$0xf]
      %v316 = vld [vmem:[%s1 + $0x130] sm:$0xf]
      %v317 = vld [vmem:[%s1 + $0x134] sm:$0xf]
      %v318 = vld [vmem:[%s1 + $0x138] sm:$0xf]
      %v319 = vld [vmem:[%s1 + $0x13c] sm:$0xf]
      %v320 = vld [vmem:[%s1 + $0x140] sm:$0xf]
      %v321 = vld [vmem:[%s1 + $0x144] sm:$0xf]
      %v322 = vld [vmem:[%s1 + $0x148] sm:$0xf]
      %v323 = vld [vmem:[%s1 + $0x14c] sm:$0xf]
      %v324 = vld [vmem:[%s1 + $0x150] sm:$0xf]
      %v325 = vld [vmem:[%s1 + $0x154] sm:$0xf]
      %v326 = vld [vmem:[%s1 + $0x158] sm:$0xf]
      %v327 = vld [vmem:[%s1 + $0x15c] sm:$0xf]
      %v328 = vld [vmem:[%s1 + $0x160] sm:$0xf]
      %v329 = vld [vmem:[%s1 + $0x164] sm:$0xf]
      %v330 = vld [vmem:[%s1 + $0x168] sm:$0xf]
      %v331 = vld [vmem:[%s1 + $0x16c] sm:$0xf]
      %v332 = vld [vmem:[%s1 + $0x170] sm:$0xf]
      %v333 = vld [vmem:[%s1 + $0x174] sm:$0xf]
      %v334 = vld [vmem:[%s1 + $0x178] sm:$0xf]
      %v335 = vld [vmem:[%s1 + $0x17c] sm:$0xf]
      %v336 = vld [vmem:[%s1 + $0x180] sm:$0xf]
      %v337 = vld [vmem:[%s1 + $0x184] sm:$0xf]
      %v338 = vld [vmem:[%s1 + $0x188] sm:$0xf]
      %v339 = vld [vmem:[%s1 + $0x18c] sm:$0xf]
      %v340 = vld [vmem:[%s1 + $0x190] sm:$0xf]
      %v341 = vld [vmem:[%s1 + $0x194] sm:$0xf]
      %v342 = vld [vmem:[%s1 + $0x198] sm:$0xf]
      %v343 = vld [vmem:[%s1 + $0x19c] sm:$0xf]
      %v344 = vld [vmem:[%s1 + $0x1a0] sm:$0xf]
      %v345 = vld [vmem:[%s1 + $0x1a4] sm:$0xf]
      %v346 = vld [vmem:[%s1 + $0x1a8] sm:$0xf]
      %v347 = vld [vmem:[%s1 + $0x1ac] sm:$0xf]
      %v348 = vld [vmem:[%s1 + $0x1b0] sm:$0xf]
      %v349 = vld [vmem:[%s1 + $0x1b4] sm:$0xf]
      %v350 = vld [vmem:[%s1 + $0x1b8] sm:$0xf]
      %v351 = vld [vmem:[%s1 + $0x1bc] sm:$0xf]
      %v352 = vld [vmem:[%s1 + $0x1c0] sm:$0xf]
      %v353 = vld [vmem:[%s1 + $0x1c4] sm:$0xf]
      %v354 = vld [vmem:[%s1 + $0x1c8] sm:$0xf]
      %v355 = vld [vmem:[%s1 + $0x1cc] sm:$0xf]
      %v356 = vld [vmem:[%s1 + $0x1d0] sm:$0xf]
      %v357 = vld [vmem:[%s1 + $0x1d4] sm:$0xf]
      %v358 = vld [vmem:[%s1 + $0x1d8] sm:$0xf]
      %v359 = vld [vmem:[%s1 + $0x1dc] sm:$0xf]
      %v360 = vld [vmem:[%s1 + $0x1e0] sm:$0xf]
      %v361 = vld [vmem:[%s1 + $0x1e4] sm:$0xf]
      %v362 = vld [vmem:[%s1 + $0x1e8] sm:$0xf]
      %v363 = vld [vmem:[%s1 + $0x1ec] sm:$0xf]
      %v364 = vld [vmem:[%s1 + $0x1f0] sm:$0xf]
      %v365 = vld [vmem:[%s1 + $0x1f4] sm:$0xf]
      %v366 = vld [vmem:[%s1 + $0x1f8] sm:$0xf]
      %v367 = vld [vmem:[%s1 + $0x1fc] sm:$0xf]
      %v368 = vld [vmem:[%s2] sm:$0x1]
      %v370 = vlaneseq
      %v371 = vshrl.u32 %v370, 7
      %v372 = vsub.s32 0, %v371
      %v373 = vrot.slane %v368, %v372
      %v383 = vunpack.c.l.b16 %v232
      %v384 = vunpack.c.h.b16 %v232
      %v385 = vunpack.c.l.b16 %v233
      %v386 = vunpack.c.h.b16 %v233
      %v387 = vunpack.c.l.b16 %v234
      %v388 = vunpack.c.h.b16 %v234
      %v389 = vunpack.c.l.b16 %v235
      %v390 = vunpack.c.h.b16 %v235
      %v391 = vunpack.c.l.b16 %v236
      %v392 = vunpack.c.h.b16 %v236
      %v393 = vunpack.c.l.b16 %v237
      %v394 = vunpack.c.h.b16 %v237
      %v395 = vunpack.c.l.b16 %v238
      %v396 = vunpack.c.h.b16 %v238
      %v397 = vunpack.c.l.b16 %v239
      %v398 = vunpack.c.h.b16 %v239
      %v399 = vpack.c.b16 %v391, %v383
      %v400 = vpack.c.b16 %v392, %v384
      %v401 = vpack.c.b16 %v393, %v385
      %v402 = vpack.c.b16 %v394, %v386
      %v403 = vpack.c.b16 %v395, %v387
      %v404 = vpack.c.b16 %v396, %v388
      %v405 = vpack.c.b16 %v397, %v389
      %v406 = vpack.c.b16 %v398, %v390
      %v543 = vunpack.c.l.b16 %v240
      %v544 = vunpack.c.l.b16 %v241
      %v545 = vunpack.c.l.b16 %v242
      %v546 = vunpack.c.l.b16 %v243
      %v547 = vunpack.c.l.b16 %v244
      %v548 = vunpack.c.l.b16 %v245
      %v549 = vunpack.c.l.b16 %v246
      %v550 = vunpack.c.l.b16 %v247
      %v551 = vunpack.c.l.b16 %v248
      %v552 = vunpack.c.l.b16 %v249
      %v553 = vunpack.c.l.b16 %v250
      %v554 = vunpack.c.l.b16 %v251
      %v555 = vunpack.c.l.b16 %v252
      %v556 = vunpack.c.l.b16 %v253
      %v557 = vunpack.c.l.b16 %v254
      %v558 = vunpack.c.l.b16 %v255
      %v559 = vunpack.c.l.b16 %v256
      %v560 = vunpack.c.l.b16 %v257
      %v561 = vunpack.c.l.b16 %v258
      %v562 = vunpack.c.l.b16 %v259
      %v563 = vunpack.c.l.b16 %v260
      %v564 = vunpack.c.l.b16 %v261
      %v565 = vunpack.c.l.b16 %v262
      %v566 = vunpack.c.l.b16 %v263
      %v567 = vunpack.c.l.b16 %v264
      %v568 = vunpack.c.l.b16 %v265
      %v569 = vunpack.c.l.b16 %v266
      %v570 = vunpack.c.l.b16 %v267
      %v571 = vunpack.c.l.b16 %v268
      %v572 = vunpack.c.l.b16 %v269
      %v573 = vunpack.c.l.b16 %v270
      %v574 = vunpack.c.l.b16 %v271
      %v575 = vunpack.c.l.b16 %v272
      %v576 = vunpack.c.l.b16 %v273
      %v577 = vunpack.c.l.b16 %v274
      %v578 = vunpack.c.l.b16 %v275
      %v579 = vunpack.c.l.b16 %v276
      %v580 = vunpack.c.l.b16 %v277
      %v581 = vunpack.c.l.b16 %v278
      %v582 = vunpack.c.l.b16 %v279
      %v583 = vunpack.c.l.b16 %v280
      %v584 = vunpack.c.l.b16 %v281
      %v585 = vunpack.c.l.b16 %v282
      %v586 = vunpack.c.l.b16 %v283
      %v587 = vunpack.c.l.b16 %v284
      %v588 = vunpack.c.l.b16 %v285
      %v589 = vunpack.c.l.b16 %v286
      %v590 = vunpack.c.l.b16 %v287
      %v591 = vunpack.c.l.b16 %v288
      %v592 = vunpack.c.l.b16 %v289
      %v593 = vunpack.c.l.b16 %v290
      %v594 = vunpack.c.l.b16 %v291
      %v595 = vunpack.c.l.b16 %v292
      %v596 = vunpack.c.l.b16 %v293
      %v597 = vunpack.c.l.b16 %v294
      %v598 = vunpack.c.l.b16 %v295
      %v599 = vunpack.c.l.b16 %v296
      %v600 = vunpack.c.l.b16 %v297
      %v601 = vunpack.c.l.b16 %v298
      %v602 = vunpack.c.l.b16 %v299
      %v603 = vunpack.c.l.b16 %v300
      %v604 = vunpack.c.l.b16 %v301
      %v605 = vunpack.c.l.b16 %v302
      %v606 = vunpack.c.l.b16 %v303
      %v607 = vunpack.c.l.b16 %v304
      %v608 = vunpack.c.l.b16 %v305
      %v609 = vunpack.c.l.b16 %v306
      %v610 = vunpack.c.l.b16 %v307
      %v611 = vunpack.c.l.b16 %v308
      %v612 = vunpack.c.l.b16 %v309
      %v613 = vunpack.c.l.b16 %v310
      %v614 = vunpack.c.l.b16 %v311
      %v615 = vunpack.c.l.b16 %v312
      %v616 = vunpack.c.l.b16 %v313
      %v617 = vunpack.c.l.b16 %v314
      %v618 = vunpack.c.l.b16 %v315
      %v619 = vunpack.c.l.b16 %v316
      %v620 = vunpack.c.l.b16 %v317
      %v621 = vunpack.c.l.b16 %v318
      %v622 = vunpack.c.l.b16 %v319
      %v623 = vunpack.c.l.b16 %v320
      %v624 = vunpack.c.l.b16 %v321
      %v625 = vunpack.c.l.b16 %v322
      %v626 = vunpack.c.l.b16 %v323
      %v627 = vunpack.c.l.b16 %v324
      %v628 = vunpack.c.l.b16 %v325
      %v629 = vunpack.c.l.b16 %v326
      %v630 = vunpack.c.l.b16 %v327
      %v631 = vunpack.c.l.b16 %v328
      %v632 = vunpack.c.l.b16 %v329
      %v633 = vunpack.c.l.b16 %v330
      %v634 = vunpack.c.l.b16 %v331
      %v635 = vunpack.c.l.b16 %v332
      %v636 = vunpack.c.l.b16 %v333
      %v637 = vunpack.c.l.b16 %v334
      %v638 = vunpack.c.l.b16 %v335
      %v639 = vunpack.c.l.b16 %v336
      %v640 = vunpack.c.l.b16 %v337
      %v641 = vunpack.c.l.b16 %v338
      %v642 = vunpack.c.l.b16 %v339
      %v643 = vunpack.c.l.b16 %v340
      %v644 = vunpack.c.l.b16 %v341
      %v645 = vunpack.c.l.b16 %v342
      %v646 = vunpack.c.l.b16 %v343
      %v647 = vunpack.c.l.b16 %v344
      %v648 = vunpack.c.l.b16 %v345
      %v649 = vunpack.c.l.b16 %v346
      %v650 = vunpack.c.l.b16 %v347
      %v651 = vunpack.c.l.b16 %v348
      %v652 = vunpack.c.l.b16 %v349
      %v653 = vunpack.c.l.b16 %v350
      %v654 = vunpack.c.l.b16 %v351
      %v655 = vunpack.c.l.b16 %v352
      %v656 = vunpack.c.l.b16 %v353
      %v657 = vunpack.c.l.b16 %v354
      %v658 = vunpack.c.l.b16 %v355
      %v659 = vunpack.c.l.b16 %v356
      %v660 = vunpack.c.l.b16 %v357
      %v661 = vunpack.c.l.b16 %v358
      %v662 = vunpack.c.l.b16 %v359
      %v663 = vunpack.c.l.b16 %v360
      %v664 = vunpack.c.l.b16 %v361
      %v665 = vunpack.c.l.b16 %v362
      %v666 = vunpack.c.l.b16 %v363
      %v667 = vunpack.c.l.b16 %v364
      %v668 = vunpack.c.l.b16 %v365
      %v669 = vunpack.c.l.b16 %v366
      %v670 = vunpack.c.l.b16 %v367
      %v671 = vpack.c.b16 %v544, %v543
      %v672 = vpack.c.b16 %v546, %v545
      %v673 = vpack.c.b16 %v548, %v547
      %v674 = vpack.c.b16 %v550, %v549
      %v675 = vpack.c.b16 %v552, %v551
      %v676 = vpack.c.b16 %v554, %v553
      %v677 = vpack.c.b16 %v556, %v555
      %v678 = vpack.c.b16 %v558, %v557
      %v679 = vpack.c.b16 %v560, %v559
      %v680 = vpack.c.b16 %v562, %v561
      %v681 = vpack.c.b16 %v564, %v563
      %v682 = vpack.c.b16 %v566, %v565
      %v683 = vpack.c.b16 %v568, %v567
      %v684 = vpack.c.b16 %v570, %v569
      %v685 = vpack.c.b16 %v572, %v571
      %v686 = vpack.c.b16 %v574, %v573
      %v687 = vpack.c.b16 %v576, %v575
      %v688 = vpack.c.b16 %v578, %v577
      %v689 = vpack.c.b16 %v580, %v579
      %v690 = vpack.c.b16 %v582, %v581
      %v691 = vpack.c.b16 %v584, %v583
      %v692 = vpack.c.b16 %v586, %v585
      %v693 = vpack.c.b16 %v588, %v587
      %v694 = vpack.c.b16 %v590, %v589
      %v695 = vpack.c.b16 %v592, %v591
      %v696 = vpack.c.b16 %v594, %v593
      %v697 = vpack.c.b16 %v596, %v595
      %v698 = vpack.c.b16 %v598, %v597
      %v699 = vpack.c.b16 %v600, %v599
      %v700 = vpack.c.b16 %v602, %v601
      %v701 = vpack.c.b16 %v604, %v603
      %v702 = vpack.c.b16 %v606, %v605
      %v703 = vpack.c.b16 %v608, %v607
      %v704 = vpack.c.b16 %v610, %v609
      %v705 = vpack.c.b16 %v612, %v611
      %v706 = vpack.c.b16 %v614, %v613
      %v707 = vpack.c.b16 %v616, %v615
      %v708 = vpack.c.b16 %v618, %v617
      %v709 = vpack.c.b16 %v620, %v619
      %v710 = vpack.c.b16 %v622, %v621
      %v711 = vpack.c.b16 %v624, %v623
      %v712 = vpack.c.b16 %v626, %v625
      %v713 = vpack.c.b16 %v628, %v627
      %v714 = vpack.c.b16 %v630, %v629
      %v715 = vpack.c.b16 %v632, %v631
      %v716 = vpack.c.b16 %v634, %v633
      %v717 = vpack.c.b16 %v636, %v635
      %v718 = vpack.c.b16 %v638, %v637
      %v719 = vpack.c.b16 %v640, %v639
      %v720 = vpack.c.b16 %v642, %v641
      %v721 = vpack.c.b16 %v644, %v643
      %v722 = vpack.c.b16 %v646, %v645
      %v723 = vpack.c.b16 %v648, %v647
      %v724 = vpack.c.b16 %v650, %v649
      %v725 = vpack.c.b16 %v652, %v651
      %v726 = vpack.c.b16 %v654, %v653
      %v727 = vpack.c.b16 %v656, %v655
      %v728 = vpack.c.b16 %v658, %v657
      %v729 = vpack.c.b16 %v660, %v659
      %v730 = vpack.c.b16 %v662, %v661
      %v731 = vpack.c.b16 %v664, %v663
      %v732 = vpack.c.b16 %v666, %v665
      %v733 = vpack.c.b16 %v668, %v667
      %v734 = vpack.c.b16 %v670, %v669
      %799 = vmatprep.subr.bf16.mxu0 0
      %800 = vmatpush1.bf16.msra.mxu0 %v678
      %801 = vmatprep.subr.bf16.mxu0 0
      %802 = vmatpush1.bf16.msra.mxu0 %v677
      %803 = vmatprep.subr.bf16.mxu0 0
      %804 = vmatpush1.bf16.msra.mxu0 %v676
      %805 = vmatprep.subr.bf16.mxu0 0
      %806 = vmatpush1.bf16.msra.mxu0 %v675
      %807 = vmatprep.subr.bf16.mxu0 0
      %808 = vmatpush1.bf16.msra.mxu0 %v674
      %809 = vmatprep.subr.bf16.mxu0 0
      %810 = vmatpush1.bf16.msra.mxu0 %v673
      %811 = vmatprep.subr.bf16.mxu0 0
      %812 = vmatpush1.bf16.msra.mxu0 %v672
      %813 = vmatprep.subr.bf16.mxu0 0
      %814 = vmatpush1.bf16.msra.mxu0 %v671
      %815 = vmatprep.subr.bf16.mxu0 0
      %816 = vmatpush2.bf16.msra.mxu0 %v686
      %817 = vmatprep.subr.bf16.mxu0 0
      %818 = vmatpush2.bf16.msra.mxu0 %v685
      %819 = vmatprep.subr.bf16.mxu0 0
      %820 = vmatpush2.bf16.msra.mxu0 %v684
      %821 = vmatprep.subr.bf16.mxu0 0
      %822 = vmatpush2.bf16.msra.mxu0 %v683
      %823 = vmatprep.subr.bf16.mxu0 0
      %824 = vmatpush2.bf16.msra.mxu0 %v682
      %825 = vmatprep.subr.bf16.mxu0 0
      %826 = vmatpush2.bf16.msra.mxu0 %v681
      %827 = vmatprep.subr.bf16.mxu0 0
      %828 = vmatpush2.bf16.msra.mxu0 %v680
      %829 = vmatprep.subr.bf16.mxu0 0
      %830 = vmatpush2.bf16.msra.mxu0 %v679
      %831 = vmatprep.mubr.bf16.mxu0 %v400
      %832 = vmatmul.mubr.bf16.gmra.mxu0 %v399
      %v833 = vpop.f32.mrf.mxu0
      %v834 = vadd.f32 %v373, %v833
      %v835 = vpop.f32.mrf.mxu0
      %v836 = vpop.f32.mrf.mxu0
      %v837 = vadd.f32 %v373, %v836
      %v838 = vpop.f32.mrf.mxu0
      %839 = vdwg.mxu0
      %840 = vmatprep.subr.bf16.mxu0 0
      %841 = vmatpush1.bf16.msra.mxu0 %v694
      %842 = vmatprep.subr.bf16.mxu0 0
      %843 = vmatpush1.bf16.msra.mxu0 %v693
      %844 = vmatprep.subr.bf16.mxu0 0
      %845 = vmatpush1.bf16.msra.mxu0 %v692
      %846 = vmatprep.subr.bf16.mxu0 0
      %847 = vmatpush1.bf16.msra.mxu0 %v691
      %848 = vmatprep.subr.bf16.mxu0 0
      %849 = vmatpush1.bf16.msra.mxu0 %v690
      %850 = vmatprep.subr.bf16.mxu0 0
      %851 = vmatpush1.bf16.msra.mxu0 %v689
      %852 = vmatprep.subr.bf16.mxu0 0
      %853 = vmatpush1.bf16.msra.mxu0 %v688
      %854 = vmatprep.subr.bf16.mxu0 0
      %855 = vmatpush1.bf16.msra.mxu0 %v687
      %856 = vmatprep.subr.bf16.mxu0 0
      %857 = vmatpush2.bf16.msra.mxu0 %v702
      %858 = vmatprep.subr.bf16.mxu0 0
      %859 = vmatpush2.bf16.msra.mxu0 %v701
      %860 = vmatprep.subr.bf16.mxu0 0
      %861 = vmatpush2.bf16.msra.mxu0 %v700
      %862 = vmatprep.subr.bf16.mxu0 0
      %863 = vmatpush2.bf16.msra.mxu0 %v699
      %864 = vmatprep.subr.bf16.mxu0 0
      %865 = vmatpush2.bf16.msra.mxu0 %v698
      %866 = vmatprep.subr.bf16.mxu0 0
      %867 = vmatpush2.bf16.msra.mxu0 %v697
      %868 = vmatprep.subr.bf16.mxu0 0
      %869 = vmatpush2.bf16.msra.mxu0 %v696
      %870 = vmatprep.subr.bf16.mxu0 0
      %871 = vmatpush2.bf16.msra.mxu0 %v695
      %872 = vmatprep.mubr.bf16.mxu0 %v402
      %873 = vmatmul.mubr.bf16.gmra.mxu0 %v401
      %v874 = vpop.f32.mrf.mxu0
      %v875 = vadd.f32 %v834, %v874
      %v876 = vpop.f32.mrf.mxu0
      %v877 = vpop.f32.mrf.mxu0
      %v878 = vadd.f32 %v837, %v877
      %v879 = vpop.f32.mrf.mxu0
      %880 = vdwg.mxu0
      %881 = vmatprep.subr.bf16.mxu0 0
      %882 = vmatpush1.bf16.msra.mxu0 %v710
      %883 = vmatprep.subr.bf16.mxu0 0
      %884 = vmatpush1.bf16.msra.mxu0 %v709
      %885 = vmatprep.subr.bf16.mxu0 0
      %886 = vmatpush1.bf16.msra.mxu0 %v708
      %887 = vmatprep.subr.bf16.mxu0 0
      %888 = vmatpush1.bf16.msra.mxu0 %v707
      %889 = vmatprep.subr.bf16.mxu0 0
      %890 = vmatpush1.bf16.msra.mxu0 %v706
      %891 = vmatprep.subr.bf16.mxu0 0
      %892 = vmatpush1.bf16.msra.mxu0 %v705
      %893 = vmatprep.subr.bf16.mxu0 0
      %894 = vmatpush1.bf16.msra.mxu0 %v704
      %895 = vmatprep.subr.bf16.mxu0 0
      %896 = vmatpush1.bf16.msra.mxu0 %v703
      %897 = vmatprep.subr.bf16.mxu0 0
      %898 = vmatpush2.bf16.msra.mxu0 %v718
      %899 = vmatprep.subr.bf16.mxu0 0
      %900 = vmatpush2.bf16.msra.mxu0 %v717
      %901 = vmatprep.subr.bf16.mxu0 0
      %902 = vmatpush2.bf16.msra.mxu0 %v716
      %903 = vmatprep.subr.bf16.mxu0 0
      %904 = vmatpush2.bf16.msra.mxu0 %v715
      %905 = vmatprep.subr.bf16.mxu0 0
      %906 = vmatpush2.bf16.msra.mxu0 %v714
      %907 = vmatprep.subr.bf16.mxu0 0
      %908 = vmatpush2.bf16.msra.mxu0 %v713
      %909 = vmatprep.subr.bf16.mxu0 0
      %910 = vmatpush2.bf16.msra.mxu0 %v712
      %911 = vmatprep.subr.bf16.mxu0 0
      %912 = vmatpush2.bf16.msra.mxu0 %v711
      %913 = vmatprep.mubr.bf16.mxu0 %v404
      %914 = vmatmul.mubr.bf16.gmra.mxu0 %v403
      %v915 = vpop.f32.mrf.mxu0
      %v916 = vadd.f32 %v875, %v915
      %v917 = vpop.f32.mrf.mxu0
      %v918 = vpop.f32.mrf.mxu0
      %v919 = vadd.f32 %v878, %v918
      %v920 = vpop.f32.mrf.mxu0
      %921 = vdwg.mxu0
      %922 = vmatprep.subr.bf16.mxu0 0
      %923 = vmatpush1.bf16.msra.mxu0 %v726
      %924 = vmatprep.subr.bf16.mxu0 0
      %925 = vmatpush1.bf16.msra.mxu0 %v725
      %926 = vmatprep.subr.bf16.mxu0 0
      %927 = vmatpush1.bf16.msra.mxu0 %v724
      %928 = vmatprep.subr.bf16.mxu0 0
      %929 = vmatpush1.bf16.msra.mxu0 %v723
      %930 = vmatprep.subr.bf16.mxu0 0
      %931 = vmatpush1.bf16.msra.mxu0 %v722
      %932 = vmatprep.subr.bf16.mxu0 0
      %933 = vmatpush1.bf16.msra.mxu0 %v721
      %934 = vmatprep.subr.bf16.mxu0 0
      %935 = vmatpush1.bf16.msra.mxu0 %v720
      %936 = vmatprep.subr.bf16.mxu0 0
      %937 = vmatpush1.bf16.msra.mxu0 %v719
      %938 = vmatprep.subr.bf16.mxu0 0
      %939 = vmatpush2.bf16.msra.mxu0 %v734
      %940 = vmatprep.subr.bf16.mxu0 0
      %941 = vmatpush2.bf16.msra.mxu0 %v733
      %942 = vmatprep.subr.bf16.mxu0 0
      %943 = vmatpush2.bf16.msra.mxu0 %v732
      %944 = vmatprep.subr.bf16.mxu0 0
      %945 = vmatpush2.bf16.msra.mxu0 %v731
      %946 = vmatprep.subr.bf16.mxu0 0
      %947 = vmatpush2.bf16.msra.mxu0 %v730
      %948 = vmatprep.subr.bf16.mxu0 0
      %949 = vmatpush2.bf16.msra.mxu0 %v729
      %950 = vmatprep.subr.bf16.mxu0 0
      %951 = vmatpush2.bf16.msra.mxu0 %v728
      %952 = vmatprep.subr.bf16.mxu0 0
      %953 = vmatpush2.bf16.msra.mxu0 %v727
      %954 = vmatprep.mubr.bf16.mxu0 %v406
      %955 = vmatmul.mubr.bf16.gmra.mxu0 %v405
      %v956 = vpop.f32.mrf.mxu0
      %v957 = vadd.f32 %v916, %v956
      %v958 = vpop.f32.mrf.mxu0
      %v959 = vpop.f32.mrf.mxu0
      %v960 = vadd.f32 %v919, %v959
      %v961 = vpop.f32.mrf.mxu0
      %962 = vdwg.mxu0
      %v963 = vxor.u32 %v957, 2147483648
      %v964 = vxor.u32 %v960, 2147483648
      %v965 = vmul.f32 %v963, 1.442695
      %v966 = vpow.pop %v965
      %v967 = vmul.f32 %v964, 1.442695
      %v968 = vpow.pop %v967
      %v969 = vadd.f32 %v966, 1.0
      %v970 = vadd.f32 %v968, 1.0
      %v971 = vrcp.pop %v969
      %v972 = vmul.f32 1.0, %v971
      %v973 = vrcp.pop %v970
      %v974 = vmul.f32 1.0, %v973
      %v975 = vpack.c.bf16 %v974, %v972
      %v976 = vld [vmem:[%s3] sm:$0xf]
      %v977 = vld [vmem:[%s3 + $0x4] sm:$0xf]
      %v978 = vld [vmem:[%s3 + $0x8] sm:$0xf]
      %v979 = vld [vmem:[%s3 + $0xc] sm:$0xf]
      %v980 = vld [vmem:[%s3 + $0x10] sm:$0xf]
      %v981 = vld [vmem:[%s3 + $0x14] sm:$0xf]
      %v982 = vld [vmem:[%s3 + $0x18] sm:$0xf]
      %v983 = vld [vmem:[%s3 + $0x1c] sm:$0xf]
      %v984 = vld [vmem:[%s3 + $0x20] sm:$0xf]
      %v985 = vld [vmem:[%s3 + $0x24] sm:$0xf]
      %v986 = vld [vmem:[%s3 + $0x28] sm:$0xf]
      %v987 = vld [vmem:[%s3 + $0x2c] sm:$0xf]
      %v988 = vld [vmem:[%s3 + $0x30] sm:$0xf]
      %v989 = vld [vmem:[%s3 + $0x34] sm:$0xf]
      %v990 = vld [vmem:[%s3 + $0x38] sm:$0xf]
      %v991 = vld [vmem:[%s3 + $0x3c] sm:$0xf]
      %v992 = vld [vmem:[%s4] sm:$0x1]
      %v994 = vlaneseq
      %v995 = vshrl.u32 %v994, 7
      %v996 = vsub.s32 0, %v995
      %v997 = vrot.slane %v992, %v996
      %v1015 = vunpack.c.l.b16 %v976
      %v1016 = vunpack.c.l.b16 %v977
      %v1017 = vunpack.c.l.b16 %v978
      %v1018 = vunpack.c.l.b16 %v979
      %v1019 = vunpack.c.l.b16 %v980
      %v1020 = vunpack.c.l.b16 %v981
      %v1021 = vunpack.c.l.b16 %v982
      %v1022 = vunpack.c.l.b16 %v983
      %v1023 = vunpack.c.l.b16 %v984
      %v1024 = vunpack.c.l.b16 %v985
      %v1025 = vunpack.c.l.b16 %v986
      %v1026 = vunpack.c.l.b16 %v987
      %v1027 = vunpack.c.l.b16 %v988
      %v1028 = vunpack.c.l.b16 %v989
      %v1029 = vunpack.c.l.b16 %v990
      %v1030 = vunpack.c.l.b16 %v991
      %v1031 = vpack.c.b16 %v1016, %v1015
      %v1032 = vpack.c.b16 %v1018, %v1017
      %v1033 = vpack.c.b16 %v1020, %v1019
      %v1034 = vpack.c.b16 %v1022, %v1021
      %v1035 = vpack.c.b16 %v1024, %v1023
      %v1036 = vpack.c.b16 %v1026, %v1025
      %v1037 = vpack.c.b16 %v1028, %v1027
      %v1038 = vpack.c.b16 %v1030, %v1029
      %1047 = vmatprep.subr.bf16.mxu0 0
      %1048 = vmatpush1.bf16.msra.mxu0 %v1038
      %1049 = vmatprep.subr.bf16.mxu0 0
      %1050 = vmatpush1.bf16.msra.mxu0 %v1037
      %1051 = vmatprep.subr.bf16.mxu0 0
      %1052 = vmatpush1.bf16.msra.mxu0 %v1036
      %1053 = vmatprep.subr.bf16.mxu0 0
      %1054 = vmatpush1.bf16.msra.mxu0 %v1035
      %1055 = vmatprep.subr.bf16.mxu0 0
      %1056 = vmatpush1.bf16.msra.mxu0 %v1034
      %1057 = vmatprep.subr.bf16.mxu0 0
      %1058 = vmatpush1.bf16.msra.mxu0 %v1033
      %1059 = vmatprep.subr.bf16.mxu0 0
      %1060 = vmatpush1.bf16.msra.mxu0 %v1032
      %1061 = vmatprep.subr.bf16.mxu0 0
      %1062 = vmatpush1.bf16.msra.mxu0 %v1031
      %1063 = vmatprep.subr.bf16.mxu0 0
      %1064 = vmatpush2.bf16.msra.mxu0 0
      %1065 = vmatprep.subr.bf16.mxu0 0
      %1066 = vmatpush2.bf16.msra.mxu0 0
      %1067 = vmatprep.subr.bf16.mxu0 0
      %1068 = vmatpush2.bf16.msra.mxu0 0
      %1069 = vmatprep.subr.bf16.mxu0 0
      %1070 = vmatpush2.bf16.msra.mxu0 0
      %1071 = vmatprep.subr.bf16.mxu0 0
      %1072 = vmatpush2.bf16.msra.mxu0 0
      %1073 = vmatprep.subr.bf16.mxu0 0
      %1074 = vmatpush2.bf16.msra.mxu0 0
      %1075 = vmatprep.subr.bf16.mxu0 0
      %1076 = vmatpush2.bf16.msra.mxu0 0
      %1077 = vmatprep.subr.bf16.mxu0 0
      %1078 = vmatpush2.bf16.msra.mxu0 0
      %1079 = vmatprep.mubr.bf16.mxu0 0
      %1080 = vmatmul.mubr.bf16.gmra.mxu0 %v975
      %v1081 = vpop.f32.mrf.mxu0
      %v1082 = vadd.f32 %v997, %v1081
      %v1083 = vpop.f32.mrf.mxu0
      %v1084 = vpop.f32.mrf.mxu0
      %v1085 = vadd.f32 %v997, %v1084
      %v1086 = vpop.f32.mrf.mxu0
      %1087 = vdwg.mxu0
      %1088 = vst [vmem:[%s229] sm:$0xff] %v1082
      %1089 = vst [vmem:[%s229 + $0x8] sm:$0xff] %v1085
      %s1090 = smul.u32 2, %s16
      %p1091 = scmp.lt.s32.totalorder %s1090, 3
      %s1092 = scalar_select %p1091, %s1090, 3
      %s1093 = smul.addr %s1092, 8
      %s1094 = scalar_lea.vmem %s5, %s1093
      // Predicated region
      $region41: #{my_ann_l2_sigmoid_forward.1} parent=39 // pred_check
        %p1095 = pneg %p144
      $region42: #{my_ann_l2_sigmoid_forward.1} parent=39 // pred_check_branch
        %1097 = sbr.rel (%p1095) target = $region44
      $region43: #{my_ann_l2_sigmoid_forward.1} parent=39 // pred_region
        %s1098 = smul.u32 2, %s16
      $region44: #{my_ann_l2_sigmoid_forward.1} parent=39 // pred_fallthru
        _
    $region40: #{my_ann_l2_sigmoid_forward.1} parent=5 // pred_fallthru
      _
    %p1099 = scmp.le.s32.totalorder 2, %s11
    // Predicated region
    $region45: #{my_ann_l2_sigmoid_forward.1} parent=5 // pred_check
      %p1100 = pneg %p1099
    $region46: #{my_ann_l2_sigmoid_forward.1} parent=5 // pred_check_branch
      %1102 = sbr.rel (%p1100) target = $region48
    $region47: #{my_ann_l2_sigmoid_forward.1} parent=5 // pred_region
      %s1103 = ssub.s32 %s11, 2
      // Predicated region
      $region49: #{my_ann_l2_sigmoid_forward.1} parent=47 // pred_check
        %p1104 = pneg %p150
      $region50: #{my_ann_l2_sigmoid_forward.1} parent=47 // pred_check_branch
        %1106 = sbr.rel (%p1104) target = $region52
      $region51: #{my_ann_l2_sigmoid_forward.1} parent=47 // pred_region
        %s1107 = smul.u32 2, %s17
        %p1108 = scmp.lt.s32.totalorder %s1107, 3
        %s1109 = scalar_select %p1108, %s1107, 3
        %s1110 = smul.addr %s1109, 8
        %s1111 = scalar_lea.vmem %s5, %s1110
      $region52: #{my_ann_l2_sigmoid_forward.1} parent=47 // pred_fallthru
        _
    $region48: #{my_ann_l2_sigmoid_forward.1} parent=5 // pred_fallthru
      _
  $region6: #{my_ann_l2_sigmoid_forward.1} parent=0 // loop_footer
    %s15 = sadd.s32 1, %s11
  $region7: #{my_ann_l2_sigmoid_forward.1} parent=0 // loop_footer_branch
    %10 = sbr.rel target = $region3
  $region8: #{my_ann_l2_sigmoid_forward.1} parent=0 // loop_exit
    _

</llo_original>
